<compile_context>
chip_gen: v5e
topology: v5e:2x2
jax: 0.10.0
libtpu: 0.0.40
codegen_flags: <defaults>
</compile_context>

<pallas_src>
import jax
import jax.numpy as jnp
from jax.experimental import pallas as pl
from jax.experimental.pallas import tpu as pltpu

INPUT_SIZE = 11
H1, H2, H3 = 256, 128, 64
NUM_CLASSES = 6
OUT_PAD = 128          # lane-dense padded logits width (multiple of 128)
DEFAULT_BM = 1024      # default batch tile (rows per grid step), multiple of 8


def _mlp_kernel(x_ref, w1_ref, b1_ref, w2_ref, b2_ref, w3_ref, b3_ref,
                w4_ref, b4_ref, o_ref):
    # fc1 + ReLU (bias folded into the max)
    h = jnp.maximum(
        jnp.dot(x_ref[...], w1_ref[...], preferred_element_type=jnp.float32) + b1_ref[...],
        0.0)
    # (dropout: identity at inference)
    # fc2 + ReLU
    h = jnp.maximum(
        jnp.dot(h, w2_ref[...], preferred_element_type=jnp.float32) + b2_ref[...],
        0.0)
    # fc3 + ReLU
    h = jnp.maximum(
        jnp.dot(h, w3_ref[...], preferred_element_type=jnp.float32) + b3_ref[...],
        0.0)
    # fc4 logits; w4/b4 are zero-padded to 128 lanes so this store is lane-dense
    out = jnp.dot(h, w4_ref[...], preferred_element_type=jnp.float32) + b4_ref[...]
    o_ref[...] = out.astype(o_ref.dtype)


def wine_quality_mlp_forward(x, params, block_m: int = DEFAULT_BM):
    """Fused forward pass. x: (B, 11) float32. Returns (B, 6) float32 logits."""
    (w1, b1, w2, b2, w3, b3, w4, b4) = params
    B = x.shape[0]

    # Zero-pad the final layer to 128 output lanes (lane-dense output store);
    # the padded columns are numerically inert and sliced off in the wrapper.
    w4p = jnp.zeros((H3, OUT_PAD), jnp.float32).at[:, :NUM_CLASSES].set(w4)
    b4p = jnp.zeros((1, OUT_PAD), jnp.float32).at[:, :NUM_CLASSES].set(b4)

    # Batch tile: multiple of 8 (f32 sublane), no larger than needed for small batches.
    bm = min(block_m, max(8, ((B + 7) // 8) * 8))
    bm = ((bm + 7) // 8) * 8
    n_tiles = pl.cdiv(B, bm)
    b_pad = n_tiles * bm
    if b_pad != B:
        x = jnp.pad(x, ((0, b_pad - B), (0, 0)))

    # Weights/biases: full-array block, constant index map -> VMEM-resident, no re-DMA.
    def resident(a):
        return pl.BlockSpec(a.shape, lambda i, _nd=a.ndim: (0,) * _nd)

    flops = 2 * b_pad * (INPUT_SIZE * H1 + H1 * H2 + H2 * H3 + H3 * OUT_PAD)
    bytes_accessed = (
        b_pad * (INPUT_SIZE + OUT_PAD) * 4
        + 4 * (INPUT_SIZE * H1 + H1 + H1 * H2 + H2 + H2 * H3 + H3 + H3 * OUT_PAD + OUT_PAD))

    out_padded = pl.pallas_call(
        _mlp_kernel,
        out_shape=jax.ShapeDtypeStruct((b_pad, OUT_PAD), jnp.float32),
        grid_spec=pltpu.PrefetchScalarGridSpec(
            num_scalar_prefetch=0,
            grid=(n_tiles,),
            in_specs=[pl.BlockSpec((bm, INPUT_SIZE), lambda i: (i, 0)),
                      resident(w1), resident(b1),
                      resident(w2), resident(b2),
                      resident(w3), resident(b3),
                      resident(w4p), resident(b4p)],
            out_specs=pl.BlockSpec((bm, OUT_PAD), lambda i: (i, 0)),
        ),
        compiler_params=pltpu.CompilerParams(
            dimension_semantics=("parallel",),      # megacore / v7x dual-TC sharding
            vmem_limit_bytes=32 * 1024 * 1024),
        cost_estimate=pl.CostEstimate(
            flops=flops, transcendentals=0, bytes_accessed=bytes_accessed),
    )(x, w1, b1, w2, b2, w3, b3, w4p, b4p)

    return out_padded[:B, :NUM_CLASSES]


def init_params(key):
    """Deterministic parameter init (PyTorch-like uniform fan-in init). Biases kept 2D (1, out)."""
    dims = [(INPUT_SIZE, H1), (H1, H2), (H2, H3), (H3, NUM_CLASSES)]
    params = []
    for (fan_in, fan_out) in dims:
        key, kw, kb = jax.random.split(key, 3)
        bound = 1.0 / (fan_in ** 0.5)
        w = jax.random.uniform(kw, (fan_in, fan_out), jnp.float32, -bound, bound)
        b = jax.random.uniform(kb, (1, fan_out), jnp.float32, -bound, bound)
        params += [w, b]
    return tuple(params)


def reference_forward(x, params):
    (w1, b1, w2, b2, w3, b3, w4, b4) = params
    h = jnp.maximum(x @ w1 + b1, 0.0)
    h = jnp.maximum(h @ w2 + b2, 0.0)
    h = jnp.maximum(h @ w3 + b3, 0.0)
    return h @ w4 + b4


if __name__ == "__main__":
    key = jax.random.PRNGKey(0)
    key, kx1, kx2 = jax.random.split(key, 3)
    params = init_params(key)

    # small basic case (single grid step)
    batch = 8
    x = jax.random.normal(kx1, (batch, INPUT_SIZE), dtype=jnp.float32)
    out = jax.block_until_ready(wine_quality_mlp_forward(x, params))
    ref = reference_forward(x, params)
    assert out.shape == (batch, NUM_CLASSES)
    assert jnp.allclose(out, ref, atol=1e-4, rtol=1e-4), "Pallas output mismatch vs reference"

    # ragged batch (exercises pad-and-slice + multi-step grid with resident weights)
    batch2 = 20
    x2 = jax.random.normal(kx2, (batch2, INPUT_SIZE), dtype=jnp.float32)
    out2 = jax.block_until_ready(wine_quality_mlp_forward(x2, params, block_m=8))
    ref2 = reference_forward(x2, params)
    assert out2.shape == (batch2, NUM_CLASSES)
    assert jnp.allclose(out2, ref2, atol=1e-4, rtol=1e-4), "Pallas output mismatch vs reference (ragged)"

    print("KERNEL_OK")
</pallas_src>

<mosaic_0001>
module attributes {stable_mosaic.version = 11 : i64} {
  func.func @_mlp_kernel(%arg0: i32, %arg1: memref<8x11xf32, #tpu.memory_space<vmem>>, %arg2: memref<11x256xf32, #tpu.memory_space<vmem>>, %arg3: memref<1x256xf32, #tpu.memory_space<vmem>>, %arg4: memref<256x128xf32, #tpu.memory_space<vmem>>, %arg5: memref<1x128xf32, #tpu.memory_space<vmem>>, %arg6: memref<128x64xf32, #tpu.memory_space<vmem>>, %arg7: memref<1x64xf32, #tpu.memory_space<vmem>>, %arg8: memref<64x128xf32, #tpu.memory_space<vmem>>, %arg9: memref<1x128xf32, #tpu.memory_space<vmem>>, %arg10: memref<8x128xf32, #tpu.memory_space<vmem>>) attributes {dimension_semantics = [#tpu.dimension_semantics<parallel>], iteration_bounds = array<i64: 1>, scalar_prefetch = 0 : i64, scratch_operands = 0 : i64, tpu.core_type = #tpu.core_type<tc>, window_params = [{transform_indices = @transform_0, window_bounds = array<i64: 8, 11>}, {pipeline_mode = #tpu.pipeline_mode<synchronous>, transform_indices = @transform_1, window_bounds = array<i64: 11, 256>}, {pipeline_mode = #tpu.pipeline_mode<synchronous>, transform_indices = @transform_2, window_bounds = array<i64: 1, 256>}, {pipeline_mode = #tpu.pipeline_mode<synchronous>, transform_indices = @transform_3, window_bounds = array<i64: 256, 128>}, {pipeline_mode = #tpu.pipeline_mode<synchronous>, transform_indices = @transform_4, window_bounds = array<i64: 1, 128>}, {pipeline_mode = #tpu.pipeline_mode<synchronous>, transform_indices = @transform_5, window_bounds = array<i64: 128, 64>}, {pipeline_mode = #tpu.pipeline_mode<synchronous>, transform_indices = @transform_6, window_bounds = array<i64: 1, 64>}, {pipeline_mode = #tpu.pipeline_mode<synchronous>, transform_indices = @transform_7, window_bounds = array<i64: 64, 128>}, {pipeline_mode = #tpu.pipeline_mode<synchronous>, transform_indices = @transform_8, window_bounds = array<i64: 1, 128>}, {transform_indices = @transform_9, window_bounds = array<i64: 8, 128>}]} {
    %c0 = arith.constant 0 : index
    %c0_0 = arith.constant 0 : index
    %0 = vector.load %arg1[%c0, %c0_0] : memref<8x11xf32, #tpu.memory_space<vmem>>, vector<8x11xf32>
    %c0_1 = arith.constant 0 : index
    %c0_2 = arith.constant 0 : index
    %1 = vector.load %arg2[%c0_1, %c0_2] : memref<11x256xf32, #tpu.memory_space<vmem>>, vector<11x256xf32>
    %cst = arith.constant dense<0.000000e+00> : vector<8x256xf32>
    %2 = tpu.matmul %0, %1, %cst {dimension_numbers = #tpu.dot_dimension_numbers<[1], [0], [0], [1], [0, 0, 1, 1], [], []>} : vector<8x11xf32>, vector<11x256xf32>, vector<8x256xf32> -> vector<8x256xf32>
    %c0_3 = arith.constant 0 : index
    %c0_4 = arith.constant 0 : index
    %3 = vector.load %arg3[%c0_3, %c0_4] : memref<1x256xf32, #tpu.memory_space<vmem>>, vector<1x256xf32>
    %4 = vector.broadcast %3 : vector<1x256xf32> to vector<8x256xf32>
    %5 = arith.addf %2, %4 : vector<8x256xf32>
    %cst_5 = arith.constant 0.000000e+00 : f32
    %6 = vector.broadcast %cst_5 : f32 to vector<8x256xf32>
    %7 = arith.maximumf %5, %6 : vector<8x256xf32>
    %c0_6 = arith.constant 0 : index
    %c0_7 = arith.constant 0 : index
    %8 = vector.load %arg4[%c0_6, %c0_7] : memref<256x128xf32, #tpu.memory_space<vmem>>, vector<256x128xf32>
    %cst_8 = arith.constant dense<0.000000e+00> : vector<8x128xf32>
    %9 = tpu.matmul %7, %8, %cst_8 {dimension_numbers = #tpu.dot_dimension_numbers<[1], [0], [0], [1], [0, 0, 1, 1], [], []>} : vector<8x256xf32>, vector<256x128xf32>, vector<8x128xf32> -> vector<8x128xf32>
    %c0_9 = arith.constant 0 : index
    %c0_10 = arith.constant 0 : index
    %10 = vector.load %arg5[%c0_9, %c0_10] : memref<1x128xf32, #tpu.memory_space<vmem>>, vector<1x128xf32>
    %11 = vector.broadcast %10 : vector<1x128xf32> to vector<8x128xf32>
    %12 = arith.addf %9, %11 : vector<8x128xf32>
    %cst_11 = arith.constant 0.000000e+00 : f32
    %13 = vector.broadcast %cst_11 : f32 to vector<8x128xf32>
    %14 = arith.maximumf %12, %13 : vector<8x128xf32>
    %c0_12 = arith.constant 0 : index
    %c0_13 = arith.constant 0 : index
    %15 = vector.load %arg6[%c0_12, %c0_13] : memref<128x64xf32, #tpu.memory_space<vmem>>, vector<128x64xf32>
    %cst_14 = arith.constant dense<0.000000e+00> : vector<8x64xf32>
    %16 = tpu.matmul %14, %15, %cst_14 {dimension_numbers = #tpu.dot_dimension_numbers<[1], [0], [0], [1], [0, 0, 1, 1], [], []>} : vector<8x128xf32>, vector<128x64xf32>, vector<8x64xf32> -> vector<8x64xf32>
    %c0_15 = arith.constant 0 : index
    %c0_16 = arith.constant 0 : index
    %17 = vector.load %arg7[%c0_15, %c0_16] : memref<1x64xf32, #tpu.memory_space<vmem>>, vector<1x64xf32>
    %18 = vector.broadcast %17 : vector<1x64xf32> to vector<8x64xf32>
    %19 = arith.addf %16, %18 : vector<8x64xf32>
    %cst_17 = arith.constant 0.000000e+00 : f32
    %20 = vector.broadcast %cst_17 : f32 to vector<8x64xf32>
    %21 = arith.maximumf %19, %20 : vector<8x64xf32>
    %c0_18 = arith.constant 0 : index
    %c0_19 = arith.constant 0 : index
    %22 = vector.load %arg8[%c0_18, %c0_19] : memref<64x128xf32, #tpu.memory_space<vmem>>, vector<64x128xf32>
    %cst_20 = arith.constant dense<0.000000e+00> : vector<8x128xf32>
    %23 = tpu.matmul %21, %22, %cst_20 {dimension_numbers = #tpu.dot_dimension_numbers<[1], [0], [0], [1], [0, 0, 1, 1], [], []>} : vector<8x64xf32>, vector<64x128xf32>, vector<8x128xf32> -> vector<8x128xf32>
    %c0_21 = arith.constant 0 : index
    %c0_22 = arith.constant 0 : index
    %24 = vector.load %arg9[%c0_21, %c0_22] : memref<1x128xf32, #tpu.memory_space<vmem>>, vector<1x128xf32>
    %25 = vector.broadcast %24 : vector<1x128xf32> to vector<8x128xf32>
    %26 = arith.addf %23, %25 : vector<8x128xf32>
    %c0_23 = arith.constant 0 : index
    %c0_24 = arith.constant 0 : index
    %27 = vector.load %arg10[%c0_23, %c0_24] : memref<8x128xf32, #tpu.memory_space<vmem>>, vector<8x128xf32>
    tpu.vector_store %arg10[%c0_23, %c0_24], %26 {strides = array<i32>} : memref<8x128xf32, #tpu.memory_space<vmem>>, vector<8x128xf32>,
    return
  }
  func.func @transform_0(%arg0: i32) -> (i32, i32) {
    %c0_i32 = arith.constant 0 : i32
    %c0_i32_0 = arith.constant 0 : i32
    return %arg0, %c0_i32 : i32, i32
  }
  func.func @transform_1(%arg0: i32) -> (i32, i32) {
    %c0_i32 = arith.constant 0 : i32
    %c0_i32_0 = arith.constant 0 : i32
    %c0_i32_1 = arith.constant 0 : i32
    return %c0_i32, %c0_i32_0 : i32, i32
  }
  func.func @transform_2(%arg0: i32) -> (i32, i32) {
    %c0_i32 = arith.constant 0 : i32
    %c0_i32_0 = arith.constant 0 : i32
    %c0_i32_1 = arith.constant 0 : i32
    return %c0_i32, %c0_i32_0 : i32, i32
  }
  func.func @transform_3(%arg0: i32) -> (i32, i32) {
    %c0_i32 = arith.constant 0 : i32
    %c0_i32_0 = arith.constant 0 : i32
    %c0_i32_1 = arith.constant 0 : i32
    return %c0_i32, %c0_i32_0 : i32, i32
  }
  func.func @transform_4(%arg0: i32) -> (i32, i32) {
    %c0_i32 = arith.constant 0 : i32
    %c0_i32_0 = arith.constant 0 : i32
    %c0_i32_1 = arith.constant 0 : i32
    return %c0_i32, %c0_i32_0 : i32, i32
  }
  func.func @transform_5(%arg0: i32) -> (i32, i32) {
    %c0_i32 = arith.constant 0 : i32
    %c0_i32_0 = arith.constant 0 : i32
    %c0_i32_1 = arith.constant 0 : i32
    return %c0_i32, %c0_i32_0 : i32, i32
  }
  func.func @transform_6(%arg0: i32) -> (i32, i32) {
    %c0_i32 = arith.constant 0 : i32
    %c0_i32_0 = arith.constant 0 : i32
    %c0_i32_1 = arith.constant 0 : i32
    return %c0_i32, %c0_i32_0 : i32, i32
  }
  func.func @transform_7(%arg0: i32) -> (i32, i32) {
    %c0_i32 = arith.constant 0 : i32
    %c0_i32_0 = arith.constant 0 : i32
    %c0_i32_1 = arith.constant 0 : i32
    return %c0_i32, %c0_i32_0 : i32, i32
  }
  func.func @transform_8(%arg0: i32) -> (i32, i32) {
    %c0_i32 = arith.constant 0 : i32
    %c0_i32_0 = arith.constant 0 : i32
    %c0_i32_1 = arith.constant 0 : i32
    return %c0_i32, %c0_i32_0 : i32, i32
  }
  func.func @transform_9(%arg0: i32) -> (i32, i32) {
    %c0_i32 = arith.constant 0 : i32
    %c0_i32_0 = arith.constant 0 : i32
    return %arg0, %c0_i32 : i32, i32
  }
}

</mosaic_0001>

<llo_original>
// kernel: tpu_custom_call.1
$region0: #{tpu_custom_call.1}
  #allocation0 [shape = 'u32[]', space=smem, size = 0x4, offset = 0x4, fixed_abs, tag = 'smem constant byte address 0x4 - core index']
  #allocation1 [shape = 'u32[72,128]{1,0:T(1,128)}', space=vmem, size = 0x9000, scoped, tag = 'internal scratch']
  %s0 = inlined_call_operand.vmem [shape: f32[8,11], index: 0, kind: input, shape index: {}]
  %s1 = inlined_call_operand.vmem [shape: f32[11,256], index: 1, kind: input, shape index: {}]
  %s2 = inlined_call_operand.vmem [shape: f32[1,256], index: 2, kind: input, shape index: {}]
  %s3 = inlined_call_operand.hbm [shape: f32[256,128], index: 3, kind: input, shape index: {}]
  %s4 = inlined_call_operand.vmem [shape: f32[1,128], index: 4, kind: input, shape index: {}]
  %s5 = inlined_call_operand.vmem [shape: f32[128,64], index: 5, kind: input, shape index: {}]
  %s6 = inlined_call_operand.vmem [shape: f32[1,64], index: 6, kind: input, shape index: {}]
  %s7 = inlined_call_operand.vmem [shape: f32[64,128], index: 7, kind: input, shape index: {}]
  %s8 = inlined_call_operand.vmem [shape: f32[1,128], index: 8, kind: input, shape index: {}]
  %s9 = inlined_call_operand.hbm [shape: f32[8,128], index: 9, kind: output, shape index: {}]
  %s10 = sld [smem:[#allocation0]]
  $region50: #{tpu_custom_call.1} parent=0
    _
  %s12 = ssub.s32 1, %s10
  %s13 = scalar_select 0, %s12, %s10
  $region1: #{tpu_custom_call.1} parent=0
    #allocation2 [shape = 'u8[131072]{0}', space=vmem, size = 0x20000, scoped, tag = 'input window, operand 3, single buffered']
    #allocation3 [shape = 's32[1]{0}', space=sflag, size = 0x4, scoped, tag = 'scoped memory for tpu_custom_call.1']
    #allocation4 [shape = 's32[1]{0}', space=sflag, size = 0x4, scoped, tag = 'scoped memory for tpu_custom_call.1']
    #allocation5 [shape = 'u8[4096]{0}', space=vmem, size = 0x1000, scoped, tag = 'output window, operand 0, single buffered']
    %14 = vsyncpa [#allocation3], 0
    %15 = vsyncpa [#allocation4], 0
    // Predicated region
    $region2: #{tpu_custom_call.1} parent=1 // pred_check
      _
    $region3: #{tpu_custom_call.1} parent=1 // pred_check_branch
      %17 = sbr.rel (0) target = $region5
    $region4: #{tpu_custom_call.1} parent=1 // pred_region
      _
    $region5: #{tpu_custom_call.1} parent=1 // pred_fallthru
      _
    // Predicated region
    $region6: #{tpu_custom_call.1} parent=1 // pred_check
      _
    $region7: #{tpu_custom_call.1} parent=1 // pred_check_branch
      %19 = sbr.rel (0) target = $region9
    $region8: #{tpu_custom_call.1} parent=1 // pred_region
      _
    $region9: #{tpu_custom_call.1} parent=1 // pred_fallthru
      _
    // Predicated region
    $region10: #{tpu_custom_call.1} parent=1 // pred_check
      _
    $region11: #{tpu_custom_call.1} parent=1 // pred_check_branch
      %21 = sbr.rel (0) target = $region13
    $region12: #{tpu_custom_call.1} parent=1 // pred_region
      _
    $region13: #{tpu_custom_call.1} parent=1 // pred_fallthru
      _
    // Predicated region
    $region14: #{tpu_custom_call.1} parent=1 // pred_check
      _
    $region15: #{tpu_custom_call.1} parent=1 // pred_check_branch
      %23 = sbr.rel (0) target = $region17
    $region16: #{tpu_custom_call.1} parent=1 // pred_region
      %25 = vsyncadd [#allocation3], 0
      %s26 = sshll.u32 %s3, 4
      %s27 = int_to_ptr.hbm [resolvable:$true] %s26
      %s28 = sshll.u32 [#allocation2], 4
      %s29 = int_to_ptr.vmem [resolvable:$true] %s28
      %34 = dma.hbm_to_vmem [thread:$0]  %s27, 4096, %s29, [#allocation3], 128, 128, 8
    $region17: #{tpu_custom_call.1} parent=1 // pred_fallthru
      _
    // Predicated region
    $region18: #{tpu_custom_call.1} parent=1 // pred_check
      _
    $region19: #{tpu_custom_call.1} parent=1 // pred_check_branch
      %36 = sbr.rel (0) target = $region21
    $region20: #{tpu_custom_call.1} parent=1 // pred_region
      _
    $region21: #{tpu_custom_call.1} parent=1 // pred_fallthru
      _
    // Predicated region
    $region22: #{tpu_custom_call.1} parent=1 // pred_check
      _
    $region23: #{tpu_custom_call.1} parent=1 // pred_check_branch
      %38 = sbr.rel (0) target = $region25
    $region24: #{tpu_custom_call.1} parent=1 // pred_region
      _
    $region25: #{tpu_custom_call.1} parent=1 // pred_fallthru
      _
    // Predicated region
    $region26: #{tpu_custom_call.1} parent=1 // pred_check
      _
    $region27: #{tpu_custom_call.1} parent=1 // pred_check_branch
      %40 = sbr.rel (0) target = $region29
    $region28: #{tpu_custom_call.1} parent=1 // pred_region
      _
    $region29: #{tpu_custom_call.1} parent=1 // pred_fallthru
      _
    // Predicated region
    $region30: #{tpu_custom_call.1} parent=1 // pred_check
      _
    $region31: #{tpu_custom_call.1} parent=1 // pred_check_branch
      %42 = sbr.rel (0) target = $region33
    $region32: #{tpu_custom_call.1} parent=1 // pred_region
      _
    $region33: #{tpu_custom_call.1} parent=1 // pred_fallthru
      _
    // Predicated region
    $region34: #{tpu_custom_call.1} parent=1 // pred_check
      _
    $region35: #{tpu_custom_call.1} parent=1 // pred_check_branch
      %44 = sbr.rel (0) target = $region37
    $region36: #{tpu_custom_call.1} parent=1 // pred_region
      _
    $region37: #{tpu_custom_call.1} parent=1 // pred_fallthru
      _
    // Predicated region
    $region38: #{tpu_custom_call.1} parent=1 // pred_check
      _
    $region39: #{tpu_custom_call.1} parent=1 // pred_check_branch
      %46 = sbr.rel (0) target = $region41
    $region40: #{tpu_custom_call.1} parent=1 // pred_region
      %48 = dma.done [#allocation3], 4096
    $region41: #{tpu_custom_call.1} parent=1 // pred_fallthru
      _
    %v49 = vld [vmem:[%s0] sm:$0xff]
    %v50 = vld [vmem:[%s1] sm:$0xff]
    %v51 = vld [vmem:[%s1 + $0x8] sm:$0xff]
    %v52 = vld [vmem:[%s1 + $0x10] sm:$0x7]
    %v53 = vld [vmem:[%s1 + $0x18] sm:$0x7]
    %v54 = vld [vmem:[%s2] sm:$0x3]
    %v56 = vperm.slane %v54, 0
    %v57 = vperm.slane %v54, 1
    %vm60 = vcmask 89088
    %v62 = vsel %vm60, %v49, 0
    %vm64 = vcmask 1042432
    %v66 = vsel %vm64, %v52, 0
    %v69 = vsel %vm64, %v53, 0
    %71 = vmatpush.msra.mxu0 0.0
    %72 = vmatpush.msra.mxu0 0.0
    %73 = vmatpush.msra.mxu0 0.0
    %74 = vmatpush.msra.mxu0 0.0
    %75 = vmatpush.msra.mxu0 0.0
    %76 = vmatpush.msra.mxu0 0.0
    %77 = vmatpush.msra.mxu0 0.0
    %78 = vmatpush.msra.mxu0 0.0
    %79 = vmatpush.msra.mxu0 0.0
    %80 = vmatpush.msra.mxu0 0.0
    %81 = vmatpush.msra.mxu0 0.0
    %82 = vmatpush.msra.mxu0 0.0
    %83 = vmatpush.msra.mxu0 0.0
    %84 = vmatpush.msra.mxu0 0.0
    %85 = vmatpush.msra.mxu0 %v66
    %86 = vmatpush.msra.mxu0 %v50
    %87 = vmatmul.f32.gmra.mxu0 %v62
    %v88 = vpop.f32.mrf.mxu0
    %v89 = vadd.f32 %v56, %v88
    %90 = vdwg.mxu0
    %91 = vmatpush.msra.mxu0 0.0
    %92 = vmatpush.msra.mxu0 0.0
    %93 = vmatpush.msra.mxu0 0.0
    %94 = vmatpush.msra.mxu0 0.0
    %95 = vmatpush.msra.mxu0 0.0
    %96 = vmatpush.msra.mxu0 0.0
    %97 = vmatpush.msra.mxu0 0.0
    %98 = vmatpush.msra.mxu0 0.0
    %99 = vmatpush.msra.mxu0 0.0
    %100 = vmatpush.msra.mxu0 0.0
    %101 = vmatpush.msra.mxu0 0.0
    %102 = vmatpush.msra.mxu0 0.0
    %103 = vmatpush.msra.mxu0 0.0
    %104 = vmatpush.msra.mxu0 0.0
    %105 = vmatpush.msra.mxu0 %v69
    %106 = vmatpush.msra.mxu0 %v51
    %107 = vmatmul.f32.gmra.mxu0 %v62
    %v108 = vpop.f32.mrf.mxu0
    %v109 = vadd.f32 %v57, %v108
    %110 = vdwg.mxu0
    %v111 = vmax.f32 %v89, 0.0
    %v112 = vmax.f32 %v109, 0.0
    %v113 = vld [vmem:[#allocation2] sm:$0xff]
    %v114 = vld [vmem:[#allocation2 + $0x8] sm:$0xff]
    %v115 = vld [vmem:[#allocation2 + $0x10] sm:$0xff]
    %v116 = vld [vmem:[#allocation2 + $0x18] sm:$0xff]
    %v117 = vld [vmem:[#allocation2 + $0x20] sm:$0xff]
    %v118 = vld [vmem:[#allocation2 + $0x28] sm:$0xff]
    %v119 = vld [vmem:[#allocation2 + $0x30] sm:$0xff]
    %v120 = vld [vmem:[#allocation2 + $0x38] sm:$0xff]
    %v121 = vld [vmem:[#allocation2 + $0x40] sm:$0xff]
    %v122 = vld [vmem:[#allocation2 + $0x48] sm:$0xff]
    %v123 = vld [vmem:[#allocation2 + $0x50] sm:$0xff]
    %v124 = vld [vmem:[#allocation2 + $0x58] sm:$0xff]
    %v125 = vld [vmem:[#allocation2 + $0x60] sm:$0xff]
    %v126 = vld [vmem:[#allocation2 + $0x68] sm:$0xff]
    %v127 = vld [vmem:[#allocation2 + $0x70] sm:$0xff]
    %v128 = vld [vmem:[#allocation2 + $0x78] sm:$0xff]
    %v129 = vld [vmem:[#allocation2 + $0x80] sm:$0xff]
    %v130 = vld [vmem:[#allocation2 + $0x88] sm:$0xff]
    %v131 = vld [vmem:[#allocation2 + $0x90] sm:$0xff]
    %v132 = vld [vmem:[#allocation2 + $0x98] sm:$0xff]
    %v133 = vld [vmem:[#allocation2 + $0xa0] sm:$0xff]
    %v134 = vld [vmem:[#allocation2 + $0xa8] sm:$0xff]
    %v135 = vld [vmem:[#allocation2 + $0xb0] sm:$0xff]
    %v136 = vld [vmem:[#allocation2 + $0xb8] sm:$0xff]
    %v137 = vld [vmem:[#allocation2 + $0xc0] sm:$0xff]
    %v138 = vld [vmem:[#allocation2 + $0xc8] sm:$0xff]
    %v139 = vld [vmem:[#allocation2 + $0xd0] sm:$0xff]
    %v140 = vld [vmem:[#allocation2 + $0xd8] sm:$0xff]
    %v141 = vld [vmem:[#allocation2 + $0xe0] sm:$0xff]
    %v142 = vld [vmem:[#allocation2 + $0xe8] sm:$0xff]
    %v143 = vld [vmem:[#allocation2 + $0xf0] sm:$0xff]
    %v144 = vld [vmem:[#allocation2 + $0xf8] sm:$0xff]
    %v145 = vld [vmem:[%s4] sm:$0x1]
    %v147 = vperm.slane %v145, 0
    %149 = vmatpush.msra.mxu0 %v128
    %150 = vmatpush.msra.mxu0 %v127
    %151 = vmatpush.msra.mxu0 %v126
    %152 = vmatpush.msra.mxu0 %v125
    %153 = vmatpush.msra.mxu0 %v124
    %154 = vmatpush.msra.mxu0 %v123
    %155 = vmatpush.msra.mxu0 %v122
    %156 = vmatpush.msra.mxu0 %v121
    %157 = vmatpush.msra.mxu0 %v120
    %158 = vmatpush.msra.mxu0 %v119
    %159 = vmatpush.msra.mxu0 %v118
    %160 = vmatpush.msra.mxu0 %v117
    %161 = vmatpush.msra.mxu0 %v116
    %162 = vmatpush.msra.mxu0 %v115
    %163 = vmatpush.msra.mxu0 %v114
    %164 = vmatpush.msra.mxu0 %v113
    %165 = vmatmul.f32.gmra.mxu0 %v111
    %v166 = vpop.f32.mrf.mxu0
    %v167 = vadd.f32 %v147, %v166
    %168 = vdwg.mxu0
    %169 = vmatpush.msra.mxu0 %v144
    %170 = vmatpush.msra.mxu0 %v143
    %171 = vmatpush.msra.mxu0 %v142
    %172 = vmatpush.msra.mxu0 %v141
    %173 = vmatpush.msra.mxu0 %v140
    %174 = vmatpush.msra.mxu0 %v139
    %175 = vmatpush.msra.mxu0 %v138
    %176 = vmatpush.msra.mxu0 %v137
    %177 = vmatpush.msra.mxu0 %v136
    %178 = vmatpush.msra.mxu0 %v135
    %179 = vmatpush.msra.mxu0 %v134
    %180 = vmatpush.msra.mxu0 %v133
    %181 = vmatpush.msra.mxu0 %v132
    %182 = vmatpush.msra.mxu0 %v131
    %183 = vmatpush.msra.mxu0 %v130
    %184 = vmatpush.msra.mxu0 %v129
    %185 = vmatmul.f32.gmra.mxu0 %v112
    %v186 = vpop.f32.mrf.mxu0
    %v187 = vadd.f32 %v167, %v186
    %188 = vdwg.mxu0
    %v189 = vmax.f32 %v187, 0.0
    %v190 = vld [vmem:[%s5] sm:$0xff]
    %v191 = vld [vmem:[%s5 + $0x8] sm:$0xff]
    %v192 = vld [vmem:[%s5 + $0x10] sm:$0xff]
    %v193 = vld [vmem:[%s5 + $0x18] sm:$0xff]
    %v194 = vld [vmem:[%s5 + $0x20] sm:$0xff]
    %v195 = vld [vmem:[%s5 + $0x28] sm:$0xff]
    %v196 = vld [vmem:[%s5 + $0x30] sm:$0xff]
    %v197 = vld [vmem:[%s5 + $0x38] sm:$0xff]
    %v198 = vld [vmem:[%s5 + $0x40] sm:$0xff]
    %v199 = vld [vmem:[%s5 + $0x48] sm:$0xff]
    %v200 = vld [vmem:[%s5 + $0x50] sm:$0xff]
    %v201 = vld [vmem:[%s5 + $0x58] sm:$0xff]
    %v202 = vld [vmem:[%s5 + $0x60] sm:$0xff]
    %v203 = vld [vmem:[%s5 + $0x68] sm:$0xff]
    %v204 = vld [vmem:[%s5 + $0x70] sm:$0xff]
    %v205 = vld [vmem:[%s5 + $0x78] sm:$0xff]
    %v206 = vld [vmem:[%s6] sm:$0x1]
    %v208 = vperm.slane %v206, 0
    %210 = vmatpush.msra.mxu0 %v205
    %211 = vmatpush.msra.mxu0 %v204
    %212 = vmatpush.msra.mxu0 %v203
    %213 = vmatpush.msra.mxu0 %v202
    %214 = vmatpush.msra.mxu0 %v201
    %215 = vmatpush.msra.mxu0 %v200
    %216 = vmatpush.msra.mxu0 %v199
    %217 = vmatpush.msra.mxu0 %v198
    %218 = vmatpush.msra.mxu0 %v197
    %219 = vmatpush.msra.mxu0 %v196
    %220 = vmatpush.msra.mxu0 %v195
    %221 = vmatpush.msra.mxu0 %v194
    %222 = vmatpush.msra.mxu0 %v193
    %223 = vmatpush.msra.mxu0 %v192
    %224 = vmatpush.msra.mxu0 %v191
    %225 = vmatpush.msra.mxu0 %v190
    %226 = vmatmul.f32.gmra.mxu0 %v189
    %v227 = vpop.f32.mrf.mxu0
    %v228 = vadd.f32 %v208, %v227
    %229 = vdwg.mxu0
    %v230 = vmax.f32 %v228, 0.0
    %v231 = vld [vmem:[%s7] sm:$0xff]
    %v232 = vld [vmem:[%s7 + $0x8] sm:$0xff]
    %v233 = vld [vmem:[%s7 + $0x10] sm:$0xff]
    %v234 = vld [vmem:[%s7 + $0x18] sm:$0xff]
    %v235 = vld [vmem:[%s7 + $0x20] sm:$0xff]
    %v236 = vld [vmem:[%s7 + $0x28] sm:$0xff]
    %v237 = vld [vmem:[%s7 + $0x30] sm:$0xff]
    %v238 = vld [vmem:[%s7 + $0x38] sm:$0xff]
    %v239 = vld [vmem:[%s8] sm:$0x1]
    %v241 = vperm.slane %v239, 0
    %vm243 = vcmask 523264
    %v245 = vsel %vm243, %v230, 0
    %247 = vmatpush.msra.mxu0 0.0
    %248 = vmatpush.msra.mxu0 0.0
    %249 = vmatpush.msra.mxu0 0.0
    %250 = vmatpush.msra.mxu0 0.0
    %251 = vmatpush.msra.mxu0 0.0
    %252 = vmatpush.msra.mxu0 0.0
    %253 = vmatpush.msra.mxu0 0.0
    %254 = vmatpush.msra.mxu0 0.0
    %255 = vmatpush.msra.mxu0 %v238
    %256 = vmatpush.msra.mxu0 %v237
    %257 = vmatpush.msra.mxu0 %v236
    %258 = vmatpush.msra.mxu0 %v235
    %259 = vmatpush.msra.mxu0 %v234
    %260 = vmatpush.msra.mxu0 %v233
    %261 = vmatpush.msra.mxu0 %v232
    %262 = vmatpush.msra.mxu0 %v231
    %263 = vmatmul.f32.gmra.mxu0 %v245
    %v264 = vpop.f32.mrf.mxu0
    %v265 = vadd.f32 %v241, %v264
    %266 = vdwg.mxu0
    %267 = vst [vmem:[#allocation5] sm:$0xff] %v265
    // Predicated region
    $region42: #{tpu_custom_call.1} parent=1 // pred_check
      _
    $region43: #{tpu_custom_call.1} parent=1 // pred_check_branch
      %269 = sbr.rel (0) target = $region45
    $region44: #{tpu_custom_call.1} parent=1 // pred_region
      %271 = vsyncadd [#allocation4], 0
      %s273 = sshll.u32 [#allocation5], 4
      %s274 = int_to_ptr.vmem [resolvable:$true] %s273
      %s275 = sshll.u32 %s9, 4
      %s276 = int_to_ptr.hbm [resolvable:$true] %s275
      %278 = dma.vmem_to_hbm [thread:$0]  %s274, 128, %s276, [#allocation4]
    $region45: #{tpu_custom_call.1} parent=1 // pred_fallthru
      _
    // Predicated region
    $region46: #{tpu_custom_call.1} parent=1 // pred_check
      _
    $region47: #{tpu_custom_call.1} parent=1 // pred_check_branch
      %280 = sbr.rel (0) target = $region49
    $region48: #{tpu_custom_call.1} parent=1 // pred_region
      %282 = dma.done [#allocation4], 128
    $region49: #{tpu_custom_call.1} parent=1 // pred_fallthru
      _
    %283 = vsyncpa [#allocation3], 1
    %284 = vsyncpa [#allocation4], 1

</llo_original>
